<compile_context>
chip_gen: v6e
topology: v6e:2x2x1
jax: 0.10.0
libtpu: 0.0.40
codegen_flags: <defaults>
</compile_context>

<pallas_src>
import functools

import jax
import jax.numpy as jnp
from jax import lax
from jax.experimental import pallas as pl
from jax.experimental.pallas import tpu as pltpu


def _embedding_block_kernel(idx_ref, table_ref, out_ref, *, normalize):
    """One token-block of EmbeddingBlock.forward.

    idx_ref  : VMEM (block_n, 1) int32     token ids for this block
    table_ref: VMEM (num, out_dim) f32     pre-projected embedding table
    out_ref  : VMEM (block_n, out_dim) f32
    """
    block_n = out_ref.shape[0]
    num = table_ref.shape[0]

    ids = idx_ref[...]                                          # (block_n, 1)
    iota = lax.broadcasted_iota(jnp.int32, (block_n, num), 1)   # (block_n, num)
    onehot = (iota == ids).astype(jnp.float32)

    # Gather as a one-hot matmul on the MXU (single vmatmul instead of a
    # scalar-gated per-row copy loop). Out-of-range ids produce zero rows.
    h = jnp.dot(onehot, table_ref[...], preferred_element_type=jnp.float32)

    if normalize:
        # F.normalize(dim=-1): x / max(||x||_2, 1e-12); rsqrt goes to the EUP.
        sumsq = jnp.sum(h * h, axis=-1, keepdims=True)
        h = h * lax.rsqrt(jnp.maximum(sumsq, 1e-24))

    out_ref[...] = h


def embedding_block_forward(indices, embed, w_hidden_t=None, *, block_n=64):
    """EmbeddingBlock.forward.

    indices    : (B, S) int   token ids
    embed      : (num, dim) f32 embedding table
    w_hidden_t : (dim, hidden) f32 == nn.Linear(dim, hidden, bias=False).weight.T,
                 or None for the dim_reduct=False (identity head) path.
    returns    : (B, S, out_dim) f32
    """
    B, S = indices.shape

    if w_hidden_t is not None:
        # Fold the bias-free Linear into the table once (project-then-gather).
        table = jnp.dot(
            embed.astype(jnp.float32),
            w_hidden_t.astype(jnp.float32),
            preferred_element_type=jnp.float32,
            precision=lax.Precision.HIGHEST,
        )
        normalize = True
    else:
        table = embed.astype(jnp.float32)
        normalize = False

    num, out_dim = table.shape

    flat_idx = indices.reshape(-1).astype(jnp.int32)
    N = flat_idx.shape[0]
    n_blocks = pl.cdiv(N, block_n)
    N_pad = n_blocks * block_n
    if N_pad != N:
        flat_idx = jnp.pad(flat_idx, (0, N_pad - N))
    idx2d = flat_idx.reshape(N_pad, 1)

    kernel = functools.partial(_embedding_block_kernel, normalize=normalize)

    out = pl.pallas_call(
        kernel,
        out_shape=jax.ShapeDtypeStruct((N_pad, out_dim), jnp.float32),
        grid_spec=pltpu.PrefetchScalarGridSpec(
            num_scalar_prefetch=0,
            grid=(n_blocks,),
            in_specs=[
                # per-block slice of the token ids
                pl.BlockSpec((block_n, 1), lambda i: (i, 0)),
                # small pre-projected table, VMEM-resident across the grid
                pl.BlockSpec((num, out_dim), lambda i: (0, 0)),
            ],
            out_specs=pl.BlockSpec((block_n, out_dim), lambda i: (i, 0)),
        ),
        compiler_params=pltpu.CompilerParams(
            dimension_semantics=("parallel",),
        ),
    )(idx2d, table)

    return out[:N].reshape(B, S, out_dim)


def reference_forward(indices, embed, w_hidden_t=None):
    """Pure-JAX reference matching the torch EmbeddingBlock semantics."""
    g = embed[indices].astype(jnp.float32)                     # (B, S, dim)
    if w_hidden_t is None:
        return g                                               # dim_reduct=False
    h = jnp.einsum(
        "bsd,dh->bsh",
        g,
        w_hidden_t.astype(jnp.float32),
        precision=lax.Precision.HIGHEST,
    )
    norm = jnp.sqrt(jnp.sum(h * h, axis=-1, keepdims=True))
    return h / jnp.maximum(norm, 1e-12)


if __name__ == "__main__":
    key = jax.random.PRNGKey(0)
    k1, k2, k3, k4, kw1, kw2, kw3, kidx = jax.random.split(key, 8)

    # PoiEnhancer-style (small) shapes: three LLM embedding tables reduced to
    # hidden = 256, one POI table used as-is (dim_reduct=False).
    num_llm, llm_dim, hidden = 64, 48, 256
    num_poi, poi_dim = 64, 256
    B, S = 2, 64

    llm_tables = [
        jax.random.normal(k, (num_llm, llm_dim), dtype=jnp.float32)
        for k in (k1, k2, k3)
    ]
    llm_ws = [
        0.02 * jax.random.normal(k, (llm_dim, hidden), dtype=jnp.float32)
        for k in (kw1, kw2, kw3)
    ]
    poi_table = jax.random.normal(k4, (num_poi, poi_dim), dtype=jnp.float32)
    x = jax.random.randint(kidx, (B, S), 0, num_llm, dtype=jnp.int32)

    # llm_layer{1,2,3}: embedding -> Linear(no bias) -> L2 normalize
    for tbl, w in zip(llm_tables, llm_ws):
        out = embedding_block_forward(x, tbl, w)
        out = jax.block_until_ready(out)
        ref = reference_forward(x, tbl, w)
        assert out.shape == (B, S, hidden)
        assert out.dtype == jnp.float32
        assert jnp.allclose(out, ref, atol=1e-5, rtol=1e-5), "llm path mismatch"

    # poi_layer: embedding lookup only (dim_reduct=False -> identity head)
    y = embedding_block_forward(x, poi_table, None)
    y = jax.block_until_ready(y)
    ref_y = reference_forward(x, poi_table, None)
    assert y.shape == (B, S, poi_dim)
    assert jnp.allclose(y, ref_y, atol=1e-5, rtol=1e-5), "poi path mismatch"

    print("KERNEL_OK")
</pallas_src>

<mosaic_0001>
module attributes {stable_mosaic.version = 11 : i64} {
  func.func @_embedding_block_kernel(%arg0: i32, %arg1: memref<64x1xi32, #tpu.memory_space<vmem>>, %arg2: memref<64x256xf32, #tpu.memory_space<vmem>>, %arg3: memref<64x256xf32, #tpu.memory_space<vmem>>) attributes {dimension_semantics = [#tpu.dimension_semantics<parallel>], iteration_bounds = array<i64: 2>, scalar_prefetch = 0 : i64, scratch_operands = 0 : i64, tpu.core_type = #tpu.core_type<tc>, window_params = [{transform_indices = @transform_0, window_bounds = array<i64: 64, 1>}, {pipeline_mode = #tpu.pipeline_mode<synchronous>, transform_indices = @transform_1, window_bounds = array<i64: 64, 256>}, {transform_indices = @transform_2, window_bounds = array<i64: 64, 256>}]} {
    %c0 = arith.constant 0 : index
    %c0_0 = arith.constant 0 : index
    %0 = vector.load %arg1[%c0, %c0_0] : memref<64x1xi32, #tpu.memory_space<vmem>>, vector<64x1xi32>
    %1 = tpu.iota {dimensions = array<i32: 1>} : vector<64x64xi32>
    %2 = vector.broadcast %0 : vector<64x1xi32> to vector<64x64xi32>
    %3 = arith.cmpi eq, %1, %2 : vector<64x64xi32>
    %4 = arith.extui %3 : vector<64x64xi1> to vector<64x64xi32>
    %5 = arith.sitofp %4 : vector<64x64xi32> to vector<64x64xf32>
    %c0_1 = arith.constant 0 : index
    %c0_2 = arith.constant 0 : index
    %6 = vector.load %arg2[%c0_1, %c0_2] : memref<64x256xf32, #tpu.memory_space<vmem>>, vector<64x256xf32>
    %cst = arith.constant dense<0.000000e+00> : vector<64x256xf32>
    %7 = tpu.matmul %5, %6, %cst {dimension_numbers = #tpu.dot_dimension_numbers<[1], [0], [0], [1], [0, 0, 1, 1], [], []>} : vector<64x64xf32>, vector<64x256xf32>, vector<64x256xf32> -> vector<64x256xf32>
    %8 = arith.mulf %7, %7 : vector<64x256xf32>
    %cst_3 = arith.constant dense<0.000000e+00> : vector<64xf32>
    %9 = vector.multi_reduction <add>, %8, %cst_3 [1] : vector<64x256xf32> to vector<64xf32>
    %10 = vector.shape_cast %9 : vector<64xf32> to vector<64x1xf32>
    %cst_4 = arith.constant 1.000000e-24 : f32
    %11 = vector.broadcast %cst_4 : f32 to vector<64x1xf32>
    %12 = arith.maximumf %10, %11 : vector<64x1xf32>
    %13 = math.rsqrt %12 : vector<64x1xf32>
    %14 = vector.broadcast %13 : vector<64x1xf32> to vector<64x256xf32>
    %15 = arith.mulf %7, %14 : vector<64x256xf32>
    %c0_5 = arith.constant 0 : index
    %c0_6 = arith.constant 0 : index
    %16 = vector.load %arg3[%c0_5, %c0_6] : memref<64x256xf32, #tpu.memory_space<vmem>>, vector<64x256xf32>
    tpu.vector_store %arg3[%c0_5, %c0_6], %15 {strides = array<i32>} : memref<64x256xf32, #tpu.memory_space<vmem>>, vector<64x256xf32>,
    return
  }
  func.func @transform_0(%arg0: i32) -> (i32, i32) {
    %c0_i32 = arith.constant 0 : i32
    %c0_i32_0 = arith.constant 0 : i32
    return %arg0, %c0_i32 : i32, i32
  }
  func.func @transform_1(%arg0: i32) -> (i32, i32) {
    %c0_i32 = arith.constant 0 : i32
    %c0_i32_0 = arith.constant 0 : i32
    %c0_i32_1 = arith.constant 0 : i32
    return %c0_i32, %c0_i32_0 : i32, i32
  }
  func.func @transform_2(%arg0: i32) -> (i32, i32) {
    %c0_i32 = arith.constant 0 : i32
    %c0_i32_0 = arith.constant 0 : i32
    return %arg0, %c0_i32 : i32, i32
  }
}

</mosaic_0001>

<llo_original>
// kernel: tpu_custom_call.1
$region0: #{tpu_custom_call.1}
  #allocation0 [shape = 'u32[]', space=smem, size = 0x4, offset = 0x4, fixed_abs, tag = 'smem constant byte address 0x4 - core index']
  #allocation1 [shape = 'u32[144,128]{1,0:T(1,128)}', space=vmem, size = 0x12000, scoped, tag = 'internal scratch']
  %s0 = inlined_call_operand.vmem [shape: s32[128,1], index: 0, kind: input, shape index: {}]
  %s1 = inlined_call_operand.vmem [shape: f32[64,256], index: 1, kind: input, shape index: {}]
  %s2 = inlined_call_operand.hbm [shape: f32[128,256], index: 2, kind: output, shape index: {}]
  %s3 = sld [smem:[#allocation0]]
  $region41: #{tpu_custom_call.1} parent=0
    _
  %s5 = ssub.s32 1, %s3
  %s6 = scalar_select 0, %s5, %s3
  $region1: #{tpu_custom_call.1} parent=0
    #allocation2 [shape = 'u8[131072]{0}', space=vmem, size = 0x20000, scoped, tag = 'output window, operand 0']
    #allocation3 [shape = 's32[2]{0}', space=sflag, size = 0x8, scoped, tag = 'scoped memory for tpu_custom_call.1']
    %7 = vsyncpa [#allocation3], 0
    %s8 = scalar_lea.sflag [#allocation3], 1
    %9 = vsyncpa %s8, 0
    loop: start=0, step=1, limit=4
    $region2: #{tpu_custom_call.1} parent=1 // loop_pre_header
      _
    $region3: #{tpu_custom_call.1} parent=1 // loop_header
      %s11 = sphi 0, %s15
      %p12 = scmp.ge.s32.totalorder %s11, 4
      %s21 = sphi 0, %s23
      %s24 = sphi 0, %s21
      %s25 = sphi 0, %s24
      %s41 = sphi 0, %s25
      %s45 = sphi 0, %s45
      %s47 = sphi 0, %s45
      %s48 = sphi 0, %s47
      %s62 = sphi 0, %s48
      %s68 = sphi 0, %s70
      %s71 = sphi 0, %s68
      %s72 = sphi 0, %s71
      %s88 = sphi 0, %s72
    $region4: #{tpu_custom_call.1} parent=1 // loop_header_branch
      %14 = sbr.rel (%p12) target = $region8
    $region5: #{tpu_custom_call.1} parent=1 // loop_body
      %s16 = ssub.s32 %s11, 1
      %s17 = ssub.s32 %s11, 2
      %s18 = sadd.s32 %s11, 1
      %s19 = ssub.s32 %s11, %s18
      %p20 = scmp.eq.s32.totalorder %s19, 0
      %s22 = sadd.s32 %s21, 1
      %s23 = scalar_select %p20, %s21, %s22
      %p26 = pneg %p20
      %p27 = scmp.eq.s32.totalorder %s11, 1
      %p28 = por %p26, %p27
      %p29 = scmp.ne.s32.totalorder %s21, %s24
      %p30 = scmp.eq.s32.totalorder %s11, 0
      %p31 = por %p29, %p30
      %p32 = scmp.ne.s32.totalorder %s21, %s24
      %p33 = scmp.eq.s32.totalorder %s16, 1
      %p34 = por %p32, %p33
      %p35 = scmp.ne.s32.totalorder %s24, %s25
      %p36 = scmp.eq.s32.totalorder %s16, 0
      %p37 = por %p35, %p36
      %p38 = scmp.ne.s32.totalorder %s24, %s25
      %p39 = scmp.eq.s32.totalorder %s17, 1
      %p40 = por %p38, %p39
      %p42 = scmp.ne.s32.totalorder %s25, %s41
      %p43 = scmp.eq.s32.totalorder %s17, 0
      %p44 = por %p42, %p43
      %s46 = sadd.s32 %s45, 1
      %p49 = scmp.eq.s32.totalorder %s11, 1
      %p50 = scmp.ne.s32.totalorder %s45, %s47
      %p51 = scmp.eq.s32.totalorder %s11, 0
      %p52 = por %p50, %p51
      %p53 = scmp.ne.s32.totalorder %s45, %s47
      %p54 = scmp.eq.s32.totalorder %s16, 1
      %p55 = por %p53, %p54
      %p56 = scmp.ne.s32.totalorder %s47, %s48
      %p57 = scmp.eq.s32.totalorder %s16, 0
      %p58 = por %p56, %p57
      %p59 = scmp.ne.s32.totalorder %s47, %s48
      %p60 = scmp.eq.s32.totalorder %s17, 1
      %p61 = por %p59, %p60
      %p63 = scmp.ne.s32.totalorder %s48, %s62
      %p64 = scmp.eq.s32.totalorder %s17, 0
      %p65 = por %p63, %p64
      %s66 = ssub.s32 %s11, %s18
      %p67 = scmp.eq.s32.totalorder %s66, 0
      %s69 = sadd.s32 %s68, 1
      %s70 = scalar_select %p67, %s68, %s69
      %p73 = pneg %p67
      %p74 = scmp.eq.s32.totalorder %s11, 1
      %p75 = por %p73, %p74
      %p76 = scmp.ne.s32.totalorder %s68, %s71
      %p77 = scmp.eq.s32.totalorder %s11, 0
      %p78 = por %p76, %p77
      %p79 = scmp.ne.s32.totalorder %s68, %s71
      %p80 = scmp.eq.s32.totalorder %s16, 1
      %p81 = por %p79, %p80
      %p82 = scmp.ne.s32.totalorder %s71, %s72
      %p83 = scmp.eq.s32.totalorder %s16, 0
      %p84 = por %p82, %p83
      %p85 = scmp.ne.s32.totalorder %s71, %s72
      %p86 = scmp.eq.s32.totalorder %s17, 1
      %p87 = por %p85, %p86
      %p89 = scmp.ne.s32.totalorder %s72, %s88
      %p90 = scmp.eq.s32.totalorder %s17, 0
      %p91 = por %p89, %p90
      %p92 = scmp.le.s32.totalorder 1, %s11
      %p93 = scmp.lt.s32.totalorder %s11, 3
      %p94 = pnand %p92, %p93
      %p95 = pneg %p94
      // Predicated region
      $region9: #{tpu_custom_call.1} parent=5 // pred_check
        _
      $region10: #{tpu_custom_call.1} parent=5 // pred_check_branch
        %97 = sbr.rel (%p94) target = $region12
      $region11: #{tpu_custom_call.1} parent=5 // pred_region
        %s98 = ssub.s32 %s11, 1
        // Predicated region
        $region13: #{tpu_custom_call.1} parent=11 // pred_check
          %p99 = pneg %p58
        $region14: #{tpu_custom_call.1} parent=11 // pred_check_branch
          %101 = sbr.rel (%p99) target = $region16
        $region15: #{tpu_custom_call.1} parent=11 // pred_region
          _
        $region16: #{tpu_custom_call.1} parent=11 // pred_fallthru
          _
      $region12: #{tpu_custom_call.1} parent=5 // pred_fallthru
        _
      %p102 = scmp.lt.s32.totalorder %s11, 2
      // Predicated region
      $region17: #{tpu_custom_call.1} parent=5 // pred_check
        %p103 = pneg %p102
      $region18: #{tpu_custom_call.1} parent=5 // pred_check_branch
        %105 = sbr.rel (%p103) target = $region20
      $region19: #{tpu_custom_call.1} parent=5 // pred_region
        // Predicated region
        $region21: #{tpu_custom_call.1} parent=19 // pred_check
          %p106 = pneg %p31
        $region22: #{tpu_custom_call.1} parent=19 // pred_check_branch
          %108 = sbr.rel (%p106) target = $region24
        $region23: #{tpu_custom_call.1} parent=19 // pred_region
          %s109 = smul.u32 8, %s11
          %p110 = scmp.lt.s32.totalorder %s109, 15
          %s111 = scalar_select %p110, %s109, 15
          %s112 = smul.addr %s111, 8
          %s113 = scalar_lea.vmem %s0, %s112
          %s114 = smul.u32 8, %s11
        $region24: #{tpu_custom_call.1} parent=19 // pred_fallthru
          _
      $region20: #{tpu_custom_call.1} parent=5 // pred_fallthru
        _
      %p115 = scmp.le.s32.totalorder 1, %s11
      %p116 = scmp.lt.s32.totalorder %s11, 3
      %p117 = pnand %p115, %p116
      %p118 = pneg %p117
      // Predicated region
      $region25: #{tpu_custom_call.1} parent=5 // pred_check
        _
      $region26: #{tpu_custom_call.1} parent=5 // pred_check_branch
        %120 = sbr.rel (%p117) target = $region28
      $region27: #{tpu_custom_call.1} parent=5 // pred_region
        %s121 = ssub.s32 %s11, 1
        %s122 = smul.u32 8, %s16
        %p123 = scmp.lt.s32.totalorder %s122, 15
        %s124 = scalar_select %p123, %s122, 15
        %s125 = smul.addr %s124, 8
        %s126 = scalar_lea.vmem %s0, %s125
        %p127 = pneg %p37
        %p128 = pneg %p34
        %p129 = pneg %p58
        %p130 = pneg %p55
        %p131 = pneg %p84
        %p132 = pneg %p81
        %s133 = sand.u32 %s71, 1
        %s134 = scalar_lea.sflag [#allocation3], %s133
        %s135 = sand.u32 %s71, 1
        %s136 = smul.addr %s135, 128
        %s137 = scalar_lea.vmem [#allocation2], %s136
        %s138 = smul.u32 8, %s16
        %p139 = scmp.lt.s32.totalorder %s138, 15
        %s140 = scalar_select %p139, %s138, 15
        %s141 = smul.addr %s140, 8
        %s142 = scalar_lea.vmem %s0, %s141
        %s143 = smul.u32 8, %s16
        %s144 = smul.u32 8, %s16
        %v145 = vld [vmem:[%s142] sm:$0xff]
        %v146 = vld [vmem:[%s142 + $0x8] sm:$0xff]
        %v147 = vld [vmem:[%s142 + $0x10] sm:$0xff]
        %v148 = vld [vmem:[%s142 + $0x18] sm:$0xff]
        %v149 = vld [vmem:[%s142 + $0x20] sm:$0xff]
        %v150 = vld [vmem:[%s142 + $0x28] sm:$0xff]
        %v151 = vld [vmem:[%s142 + $0x30] sm:$0xff]
        %v152 = vld [vmem:[%s142 + $0x38] sm:$0xff]
        %v153 = vlaneseq
        %v154 = vand.u32 %v153, 127
        %155 = vset.pattern.permute.xlu0 0
        %156 = vperm.xlu0 %155, %v145
        %v157 = vpop.permute.xlu0 %156
        %158 = vset.pattern.permute.xlu0 0
        %159 = vperm.xlu0 %158, %v146
        %v160 = vpop.permute.xlu0 %159
        %161 = vset.pattern.permute.xlu0 0
        %162 = vperm.xlu0 %161, %v147
        %v163 = vpop.permute.xlu0 %162
        %164 = vset.pattern.permute.xlu0 0
        %165 = vperm.xlu0 %164, %v148
        %v166 = vpop.permute.xlu0 %165
        %167 = vset.pattern.permute.xlu0 0
        %168 = vperm.xlu0 %167, %v149
        %v169 = vpop.permute.xlu0 %168
        %170 = vset.pattern.permute.xlu0 0
        %171 = vperm.xlu0 %170, %v150
        %v172 = vpop.permute.xlu0 %171
        %173 = vset.pattern.permute.xlu0 0
        %174 = vperm.xlu0 %173, %v151
        %v175 = vpop.permute.xlu0 %174
        %176 = vset.pattern.permute.xlu0 0
        %177 = vperm.xlu0 %176, %v152
        %v178 = vpop.permute.xlu0 %177
        %vm179 = vcmp.eq.s32.totalorder %v154, %v157
        %vm180 = vcmp.eq.s32.totalorder %v154, %v160
        %vm181 = vcmp.eq.s32.totalorder %v154, %v163
        %vm182 = vcmp.eq.s32.totalorder %v154, %v166
        %vm183 = vcmp.eq.s32.totalorder %v154, %v169
        %vm184 = vcmp.eq.s32.totalorder %v154, %v172
        %vm185 = vcmp.eq.s32.totalorder %v154, %v175
        %vm186 = vcmp.eq.s32.totalorder %v154, %v178
        %v187 = vsel %vm179, 1, 0
        %v188 = vsel %vm180, 1, 0
        %v189 = vsel %vm181, 1, 0
        %v190 = vsel %vm182, 1, 0
        %v191 = vsel %vm183, 1, 0
        %v192 = vsel %vm184, 1, 0
        %v193 = vsel %vm185, 1, 0
        %v194 = vsel %vm186, 1, 0
        %v195 = vcvt.s32.f32 %v187
        %v196 = vcvt.s32.f32 %v188
        %v197 = vcvt.s32.f32 %v189
        %v198 = vcvt.s32.f32 %v190
        %v199 = vcvt.s32.f32 %v191
        %v200 = vcvt.s32.f32 %v192
        %v201 = vcvt.s32.f32 %v193
        %v202 = vcvt.s32.f32 %v194
        %v203 = vld [vmem:[%s1] sm:$0xff]
        %v204 = vld [vmem:[%s1 + $0x8] sm:$0xff]
        %v205 = vld [vmem:[%s1 + $0x10] sm:$0xff]
        %v206 = vld [vmem:[%s1 + $0x18] sm:$0xff]
        %v207 = vld [vmem:[%s1 + $0x20] sm:$0xff]
        %v208 = vld [vmem:[%s1 + $0x28] sm:$0xff]
        %v209 = vld [vmem:[%s1 + $0x30] sm:$0xff]
        %v210 = vld [vmem:[%s1 + $0x38] sm:$0xff]
        %v211 = vld [vmem:[%s1 + $0x40] sm:$0xff]
        %v212 = vld [vmem:[%s1 + $0x48] sm:$0xff]
        %v213 = vld [vmem:[%s1 + $0x50] sm:$0xff]
        %v214 = vld [vmem:[%s1 + $0x58] sm:$0xff]
        %v215 = vld [vmem:[%s1 + $0x60] sm:$0xff]
        %v216 = vld [vmem:[%s1 + $0x68] sm:$0xff]
        %v217 = vld [vmem:[%s1 + $0x70] sm:$0xff]
        %v218 = vld [vmem:[%s1 + $0x78] sm:$0xff]
        %vm219 = vcmask 523264
        %v221 = vsel %vm219, %v195, 0
        %v224 = vsel %vm219, %v196, 0
        %v227 = vsel %vm219, %v197, 0
        %v230 = vsel %vm219, %v198, 0
        %v233 = vsel %vm219, %v199, 0
        %v236 = vsel %vm219, %v200, 0
        %v239 = vsel %vm219, %v201, 0
        %v242 = vsel %vm219, %v202, 0
        %244 = vmatprep.subr.mxu0 0.0
        %245 = vmatpush1.msra.mxu0 0.0
        %246 = vmatprep.subr.mxu0 0.0
        %247 = vmatpush1.msra.mxu0 0.0
        %248 = vmatprep.subr.mxu0 0.0
        %249 = vmatpush1.msra.mxu0 0.0
        %250 = vmatprep.subr.mxu0 0.0
        %251 = vmatpush1.msra.mxu0 0.0
        %252 = vmatprep.subr.mxu0 0.0
        %253 = vmatpush1.msra.mxu0 0.0
        %254 = vmatprep.subr.mxu0 0.0
        %255 = vmatpush1.msra.mxu0 0.0
        %256 = vmatprep.subr.mxu0 0.0
        %257 = vmatpush1.msra.mxu0 0.0
        %258 = vmatprep.subr.mxu0 0.0
        %259 = vmatpush1.msra.mxu0 0.0
        %260 = vmatprep.subr.mxu0 %v218
        %261 = vmatpush1.msra.mxu0 %v217
        %262 = vmatprep.subr.mxu0 %v216
        %263 = vmatpush1.msra.mxu0 %v215
        %264 = vmatprep.subr.mxu0 %v214
        %265 = vmatpush1.msra.mxu0 %v213
        %266 = vmatprep.subr.mxu0 %v212
        %267 = vmatpush1.msra.mxu0 %v211
        %268 = vmatprep.subr.mxu0 %v210
        %269 = vmatpush1.msra.mxu0 %v209
        %270 = vmatprep.subr.mxu0 %v208
        %271 = vmatpush1.msra.mxu0 %v207
        %272 = vmatprep.subr.mxu0 %v206
        %273 = vmatpush1.msra.mxu0 %v205
        %274 = vmatprep.subr.mxu0 %v204
        %275 = vmatpush1.msra.mxu0 %v203
        %276 = vmatprep.subr.mxu0 0.0
        %277 = vmatpush2.msra.mxu0 0.0
        %278 = vmatprep.subr.mxu0 0.0
        %279 = vmatpush2.msra.mxu0 0.0
        %280 = vmatprep.subr.mxu0 0.0
        %281 = vmatpush2.msra.mxu0 0.0
        %282 = vmatprep.subr.mxu0 0.0
        %283 = vmatpush2.msra.mxu0 0.0
        %284 = vmatprep.subr.mxu0 0.0
        %285 = vmatpush2.msra.mxu0 0.0
        %286 = vmatprep.subr.mxu0 0.0
        %287 = vmatpush2.msra.mxu0 0.0
        %288 = vmatprep.subr.mxu0 0.0
        %289 = vmatpush2.msra.mxu0 0.0
        %290 = vmatprep.subr.mxu0 0.0
        %291 = vmatpush2.msra.mxu0 0.0
        %292 = vmatprep.subr.mxu0 0.0
        %293 = vmatpush2.msra.mxu0 0.0
        %294 = vmatprep.subr.mxu0 0.0
        %295 = vmatpush2.msra.mxu0 0.0
        %296 = vmatprep.subr.mxu0 0.0
        %297 = vmatpush2.msra.mxu0 0.0
        %298 = vmatprep.subr.mxu0 0.0
        %299 = vmatpush2.msra.mxu0 0.0
        %300 = vmatprep.subr.mxu0 0.0
        %301 = vmatpush2.msra.mxu0 0.0
        %302 = vmatprep.subr.mxu0 0.0
        %303 = vmatpush2.msra.mxu0 0.0
        %304 = vmatprep.subr.mxu0 0.0
        %305 = vmatpush2.msra.mxu0 0.0
        %306 = vmatprep.subr.mxu0 0.0
        %307 = vmatpush2.msra.mxu0 0.0
        %308 = vmatprep.mubr.f32.mxu0 0.0
        %309 = vmatmul.mubr.f32.gmra.mxu0 %v221
        %v310 = vpop.f32.mrf.mxu0
        %v311 = vadd.f32 0.0, %v310
        %v312 = vpop.f32.mrf.mxu0
        %v313 = vadd.f32 0.0, %v312
        %314 = vmatprep.mubr.f32.mxu0 0.0
        %315 = vmatmul.mubr.f32.gmra.mxu0 %v224
        %v316 = vpop.f32.mrf.mxu0
        %v317 = vadd.f32 0.0, %v316
        %v318 = vpop.f32.mrf.mxu0
        %v319 = vadd.f32 0.0, %v318
        %320 = vmatprep.mubr.f32.mxu0 0.0
        %321 = vmatmul.mubr.f32.gmra.mxu0 %v227
        %v322 = vpop.f32.mrf.mxu0
        %v323 = vadd.f32 0.0, %v322
        %v324 = vpop.f32.mrf.mxu0
        %v325 = vadd.f32 0.0, %v324
        %326 = vmatprep.mubr.f32.mxu0 0.0
        %327 = vmatmul.mubr.f32.gmra.mxu0 %v230
        %v328 = vpop.f32.mrf.mxu0
        %v329 = vadd.f32 0.0, %v328
        %v330 = vpop.f32.mrf.mxu0
        %v331 = vadd.f32 0.0, %v330
        %332 = vmatprep.mubr.f32.mxu0 0.0
        %333 = vmatmul.mubr.f32.gmra.mxu0 %v233
        %v334 = vpop.f32.mrf.mxu0
        %v335 = vadd.f32 0.0, %v334
        %v336 = vpop.f32.mrf.mxu0
        %v337 = vadd.f32 0.0, %v336
        %338 = vmatprep.mubr.f32.mxu0 0.0
        %339 = vmatmul.mubr.f32.gmra.mxu0 %v236
        %v340 = vpop.f32.mrf.mxu0
        %v341 = vadd.f32 0.0, %v340
        %v342 = vpop.f32.mrf.mxu0
        %v343 = vadd.f32 0.0, %v342
        %344 = vmatprep.mubr.f32.mxu0 0.0
        %345 = vmatmul.mubr.f32.gmra.mxu0 %v239
        %v346 = vpop.f32.mrf.mxu0
        %v347 = vadd.f32 0.0, %v346
        %v348 = vpop.f32.mrf.mxu0
        %v349 = vadd.f32 0.0, %v348
        %350 = vmatprep.mubr.f32.mxu0 0.0
        %351 = vmatmul.mubr.f32.gmra.mxu0 %v242
        %v352 = vpop.f32.mrf.mxu0
        %v353 = vadd.f32 0.0, %v352
        %v354 = vpop.f32.mrf.mxu0
        %v355 = vadd.f32 0.0, %v354
        %356 = vdwg.mxu0
        %v357 = vmul.f32 %v311, %v311
        %v358 = vmul.f32 %v313, %v313
        %v359 = vmul.f32 %v317, %v317
        %v360 = vmul.f32 %v319, %v319
        %v361 = vmul.f32 %v323, %v323
        %v362 = vmul.f32 %v325, %v325
        %v363 = vmul.f32 %v329, %v329
        %v364 = vmul.f32 %v331, %v331
        %v365 = vmul.f32 %v335, %v335
        %v366 = vmul.f32 %v337, %v337
        %v367 = vmul.f32 %v341, %v341
        %v368 = vmul.f32 %v343, %v343
        %v369 = vmul.f32 %v347, %v347
        %v370 = vmul.f32 %v349, %v349
        %v371 = vmul.f32 %v353, %v353
        %v372 = vmul.f32 %v355, %v355
        %v373 = vadd.f32 %v357, %v358
        %374 = vadd.xlane.f32.xlu0 %v373
        %v375 = vpop.xlane.xlu0 %374
        %v376 = vadd.f32 %v359, %v360
        %377 = vadd.xlane.f32.xlu0 %v376
        %v378 = vpop.xlane.xlu0 %377
        %v379 = vadd.f32 %v361, %v362
        %380 = vadd.xlane.f32.xlu0 %v379
        %v381 = vpop.xlane.xlu0 %380
        %v382 = vadd.f32 %v363, %v364
        %383 = vadd.xlane.f32.xlu0 %v382
        %v384 = vpop.xlane.xlu0 %383
        %v385 = vadd.f32 %v365, %v366
        %386 = vadd.xlane.f32.xlu0 %v385
        %v387 = vpop.xlane.xlu0 %386
        %v388 = vadd.f32 %v367, %v368
        %389 = vadd.xlane.f32.xlu0 %v388
        %v390 = vpop.xlane.xlu0 %389
        %v391 = vadd.f32 %v369, %v370
        %392 = vadd.xlane.f32.xlu0 %v391
        %v393 = vpop.xlane.xlu0 %392
        %v394 = vadd.f32 %v371, %v372
        %395 = vadd.xlane.f32.xlu0 %v394
        %v396 = vpop.xlane.xlu0 %395
        %v397 = vmax.f32 %v375, 1e-24
        %v398 = vmax.f32 %v378, 1e-24
        %v399 = vmax.f32 %v381, 1e-24
        %v400 = vmax.f32 %v384, 1e-24
        %v401 = vmax.f32 %v387, 1e-24
        %v402 = vmax.f32 %v390, 1e-24
        %v403 = vmax.f32 %v393, 1e-24
        %v404 = vmax.f32 %v396, 1e-24
        %v405 = vrsqrt.pop %v397
        %v406 = vrsqrt.pop %v398
        %v407 = vrsqrt.pop %v399
        %v408 = vrsqrt.pop %v400
        %v409 = vrsqrt.pop %v401
        %v410 = vrsqrt.pop %v402
        %v411 = vrsqrt.pop %v403
        %v412 = vrsqrt.pop %v404
        %v413 = vmul.f32 %v311, %v405
        %v414 = vmul.f32 %v313, %v405
        %v415 = vmul.f32 %v317, %v406
        %v416 = vmul.f32 %v319, %v406
        %v417 = vmul.f32 %v323, %v407
        %v418 = vmul.f32 %v325, %v407
        %v419 = vmul.f32 %v329, %v408
        %v420 = vmul.f32 %v331, %v408
        %v421 = vmul.f32 %v335, %v409
        %v422 = vmul.f32 %v337, %v409
        %v423 = vmul.f32 %v341, %v410
        %v424 = vmul.f32 %v343, %v410
        %v425 = vmul.f32 %v347, %v411
        %v426 = vmul.f32 %v349, %v411
        %v427 = vmul.f32 %v353, %v412
        %v428 = vmul.f32 %v355, %v412
        %429 = vst [vmem:[%s137] sm:$0xff] %v413
        %430 = vst [vmem:[%s137 + $0x8] sm:$0xff] %v414
        %431 = vst [vmem:[%s137 + $0x10] sm:$0xff] %v415
        %432 = vst [vmem:[%s137 + $0x18] sm:$0xff] %v416
        %433 = vst [vmem:[%s137 + $0x20] sm:$0xff] %v417
        %434 = vst [vmem:[%s137 + $0x28] sm:$0xff] %v418
        %435 = vst [vmem:[%s137 + $0x30] sm:$0xff] %v419
        %436 = vst [vmem:[%s137 + $0x38] sm:$0xff] %v420
        %437 = vst [vmem:[%s137 + $0x40] sm:$0xff] %v421
        %438 = vst [vmem:[%s137 + $0x48] sm:$0xff] %v422
        %439 = vst [vmem:[%s137 + $0x50] sm:$0xff] %v423
        %440 = vst [vmem:[%s137 + $0x58] sm:$0xff] %v424
        %441 = vst [vmem:[%s137 + $0x60] sm:$0xff] %v425
        %442 = vst [vmem:[%s137 + $0x68] sm:$0xff] %v426
        %443 = vst [vmem:[%s137 + $0x70] sm:$0xff] %v427
        %444 = vst [vmem:[%s137 + $0x78] sm:$0xff] %v428
        %s445 = sand.u32 %s71, 1
        %s446 = scalar_lea.sflag [#allocation3], %s445
        %s447 = sand.u32 %s71, 1
        %s448 = smul.addr %s447, 128
        %s449 = scalar_lea.vmem [#allocation2], %s448
        // Predicated region
        $region29: #{tpu_custom_call.1} parent=27 // pred_check
          %p450 = pneg %p81
        $region30: #{tpu_custom_call.1} parent=27 // pred_check_branch
          %452 = sbr.rel (%p450) target = $region32
        $region31: #{tpu_custom_call.1} parent=27 // pred_region
          %s453 = smul.u32 8, %s16
          %s455 = ssub.s32 2048, 2048
          %456 = vsyncadd %s446, %s455
          %s457 = smul.addr %s453, 2
          %s458 = smul.addr %s457, 128
          %s459 = scalar_lea.hbm %s2, %s458
          %s460 = sshll.u32 %s449, 4
          %s461 = int_to_ptr.vmem [resolvable:$true] %s460
          %466 = dma.vmem_to_hbm [thread:$0]  %s461, 2048, %s459, %s446, 256, 256, 16
        $region32: #{tpu_custom_call.1} parent=27 // pred_fallthru
          _
      $region28: #{tpu_custom_call.1} parent=5 // pred_fallthru
        _
      %p467 = scmp.le.s32.totalorder 2, %s11
      // Predicated region
      $region33: #{tpu_custom_call.1} parent=5 // pred_check
        %p468 = pneg %p467
      $region34: #{tpu_custom_call.1} parent=5 // pred_check_branch
        %470 = sbr.rel (%p468) target = $region36
      $region35: #{tpu_custom_call.1} parent=5 // pred_region
        %s471 = ssub.s32 %s11, 2
        // Predicated region
        $region37: #{tpu_custom_call.1} parent=35 // pred_check
          %p472 = pneg %p87
        $region38: #{tpu_custom_call.1} parent=35 // pred_check_branch
          %474 = sbr.rel (%p472) target = $region40
        $region39: #{tpu_custom_call.1} parent=35 // pred_region
          %s475 = sand.u32 %s72, 1
          %s476 = scalar_lea.sflag [#allocation3], %s475
          %s477 = sand.u32 %s72, 1
          %s478 = smul.addr %s477, 128
          %s479 = scalar_lea.vmem [#allocation2], %s478
          %480 = dma.done %s476, 2048
        $region40: #{tpu_custom_call.1} parent=35 // pred_fallthru
          _
      $region36: #{tpu_custom_call.1} parent=5 // pred_fallthru
        _
    $region6: #{tpu_custom_call.1} parent=1 // loop_footer
      %s15 = sadd.s32 1, %s11
    $region7: #{tpu_custom_call.1} parent=1 // loop_footer_branch
      %10 = sbr.rel target = $region3
    $region8: #{tpu_custom_call.1} parent=1 // loop_exit
      _
    %481 = vsyncpa [#allocation3], 1
    %s482 = scalar_lea.sflag [#allocation3], 1
    %483 = vsyncpa %s482, 1

</llo_original>
